<compile_context>
chip_gen: v7x
topology: tpu7x:2x2x1
jax: 0.10.0
libtpu: 0.0.40
codegen_flags: <defaults>
</compile_context>

<pallas_src>
import functools

import jax
import jax.numpy as jnp
from jax import lax
from jax.experimental import pallas as pl
from jax.experimental.pallas import tpu as pltpu


def _ls_ce_kernel(x_ref, tgt_ref, out_ref, *, smoothing, n_total, tile_n, mask_tail):
    """Writes this tile's partial sum of the label-smoothed CE loss (lane-dense)."""
    i = pl.program_id(0)
    confidence = 1.0 - smoothing

    x = x_ref[...].astype(jnp.float32)                  # (tile_n, C) f32
    tn, c = x.shape

    m = jnp.max(x, axis=-1, keepdims=True)              # (tile_n, 1)
    xm = x - m                                          # single tile-sized f32 temp

    if mask_tail:
        # Static (trace-time) decision: only emitted when n % tile_n != 0.
        row_ids = i * tile_n + lax.broadcasted_iota(jnp.int32, (tn, 1), 0)
        valid = row_ids < n_total                       # (tile_n, 1) bool
        xm = jnp.where(valid, xm, 0.0)                  # padded rows contribute 0

    # Per-row log-sum-exp of the shifted logits (EUP exp/log, XLU row reduce).
    logterm = jnp.log(jnp.sum(jnp.exp(xm), axis=-1, keepdims=True))   # (tile_n, 1)
    if mask_tail:
        logterm = jnp.where(valid, logterm, 0.0)

    # Shifted logit at the target class via one-hot select, reduced straight to a scalar.
    col_ids = lax.broadcasted_iota(jnp.int32, (tn, c), 1)
    tgt = tgt_ref[...]                                  # (tile_n, 1) int32
    xm_tgt_sum = jnp.sum(jnp.where(col_ids == tgt, xm, 0.0))          # scalar
    xm_sum = jnp.sum(xm)                                              # scalar

    # conf + smoothing == 1  =>  the m terms cancel in the per-row loss.
    partial = (jnp.sum(logterm)
               - confidence * xm_tgt_sum
               - (smoothing / c) * xm_sum)

    # Lane-dense per-tile output block; wrapper finishes the mean.
    out_ref[...] = jnp.zeros(out_ref.shape, jnp.float32) + partial


def _default_vmem_limit_bytes():
    # Half the physical per-core VMEM, capped at 64 MiB:
    #   v7x (64 MiB VMEM)  -> 32 MiB   |   v5e/v6e (128 MiB) -> 64 MiB
    try:
        cap = int(pltpu.get_tpu_info().vmem_capacity_bytes)
    except Exception:
        cap = 128 * 1024 * 1024
    return min(64 * 1024 * 1024, cap // 2)


def _auto_tile_n(n, c, itemsize, budget_bytes, max_rows=2048):
    # Sublane packing of the input dtype: 8 rows f32, 16 bf16, 32 int8/fp8.
    sub = max(8, 32 // max(1, itemsize))
    # Per-row budget: double-buffered input tile + ~2 tile-sized f32 temporaries
    # (xm and exp(xm)) live in VMEM during the compute phase.
    per_row = c * (2 * itemsize + 2 * 4)
    rows = budget_bytes // max(1, per_row)
    rows = min(max(rows, sub), max_rows)        # cap rows: avoids lane-sparse blowup
    rows = max(sub, (rows // sub) * sub)        # sublane-aligned
    return n if rows >= n else rows


def label_smoothing_cross_entropy(
    x,
    target,
    smoothing=0.1,
    tile_n=None,
    tile_budget_bytes=24 * 1024 * 1024,
    vmem_limit_bytes=None,
):
    """x: (N, C) float (f32 or bf16) logits; target: (N,) int class ids. Scalar f32 loss.

    NOTE: out-of-range target indices silently contribute nll = lse (one-hot matches
    nothing) whereas PyTorch would error; acceptable for valid inputs.
    """
    n, c = x.shape
    itemsize = jnp.dtype(x.dtype).itemsize
    if tile_n is None:
        tile_n = _auto_tile_n(n, c, itemsize, tile_budget_bytes)
    if vmem_limit_bytes is None:
        vmem_limit_bytes = _default_vmem_limit_bytes()

    num_tiles = pl.cdiv(n, tile_n)
    mask_tail = (n % tile_n) != 0

    tgt2d = target.astype(jnp.int32).reshape(n, 1)

    kernel = functools.partial(
        _ls_ce_kernel,
        smoothing=float(smoothing),
        n_total=n,
        tile_n=tile_n,
        mask_tail=mask_tail,
    )

    partials = pl.pallas_call(
        kernel,
        out_shape=jax.ShapeDtypeStruct((num_tiles, 8, 128), jnp.float32),
        grid_spec=pltpu.PrefetchScalarGridSpec(
            num_scalar_prefetch=0,
            grid=(num_tiles,),
            in_specs=[
                pl.BlockSpec((tile_n, c), lambda i: (i, 0)),   # logits tile (VMEM)
                pl.BlockSpec((tile_n, 1), lambda i: (i, 0)),   # targets tile (VMEM)
            ],
            out_specs=pl.BlockSpec((1, 8, 128), lambda i: (i, 0, 0)),
        ),
        compiler_params=pltpu.CompilerParams(
            dimension_semantics=("parallel",),          # no revisit -> megacore on v7x
            vmem_limit_bytes=int(vmem_limit_bytes),
        ),
    )(x, tgt2d)

    # Finish the mean on the host-side XLA graph (tiny reduction).
    return jnp.sum(partials[:, 0, 0]) / n


def _reference(x, target, smoothing=0.1):
    confidence = 1.0 - smoothing
    logprobs = jax.nn.log_softmax(x.astype(jnp.float32), axis=-1)
    nll = -jnp.take_along_axis(logprobs, target[:, None].astype(jnp.int32), axis=-1)[:, 0]
    smooth = -jnp.mean(logprobs, axis=-1)
    return jnp.mean(confidence * nll + smoothing * smooth)


if __name__ == "__main__":
    # Test 1: small shapes matching the module spec (single tile).
    kx, kt = jax.random.split(jax.random.PRNGKey(0))
    N, C = 8, 32
    x = jax.random.normal(kx, (N, C), dtype=jnp.float32)
    target = jax.random.randint(kt, (N,), 0, C, dtype=jnp.int32)
    loss = jax.block_until_ready(label_smoothing_cross_entropy(x, target, smoothing=0.1))
    ref = jax.block_until_ready(_reference(x, target, smoothing=0.1))
    assert jnp.allclose(loss, ref, atol=1e-5, rtol=1e-5), (loss, ref)

    # Test 2: multi-tile parallel grid + trailing partial tile (N % tile_n != 0).
    kx2, kt2 = jax.random.split(jax.random.PRNGKey(1))
    N2, C2 = 40, 160
    x2 = jax.random.normal(kx2, (N2, C2), dtype=jnp.float32)
    target2 = jax.random.randint(kt2, (N2,), 0, C2, dtype=jnp.int32)
    loss2 = jax.block_until_ready(
        label_smoothing_cross_entropy(x2, target2, smoothing=0.1, tile_n=16)
    )
    ref2 = jax.block_until_ready(_reference(x2, target2, smoothing=0.1))
    assert jnp.allclose(loss2, ref2, atol=1e-5, rtol=1e-5), (loss2, ref2)

    # Test 3: bf16 logits (bandwidth-optimized path), multi-tile + tail masking.
    kx3, kt3 = jax.random.split(jax.random.PRNGKey(2))
    N3, C3 = 24, 256
    x3 = jax.random.normal(kx3, (N3, C3), dtype=jnp.float32).astype(jnp.bfloat16)
    target3 = jax.random.randint(kt3, (N3,), 0, C3, dtype=jnp.int32)
    loss3 = jax.block_until_ready(
        label_smoothing_cross_entropy(x3, target3, smoothing=0.1, tile_n=16)
    )
    ref3 = jax.block_until_ready(_reference(x3, target3, smoothing=0.1))
    assert jnp.allclose(loss3, ref3, atol=1e-4, rtol=1e-4), (loss3, ref3)

    print("KERNEL_OK")
</pallas_src>

<mosaic_0001>
module attributes {stable_mosaic.version = 11 : i64} {
  func.func @_ls_ce_kernel(%arg0: i32, %arg1: memref<8x32xf32, #tpu.memory_space<vmem>>, %arg2: memref<8x1xi32, #tpu.memory_space<vmem>>, %arg3: memref<1x8x128xf32, #tpu.memory_space<vmem>>) attributes {dimension_semantics = [#tpu.dimension_semantics<parallel>], iteration_bounds = array<i64: 1>, scalar_prefetch = 0 : i64, scratch_operands = 0 : i64, tpu.core_type = #tpu.core_type<tc>, window_params = [{transform_indices = @transform_0, window_bounds = array<i64: 8, 32>}, {transform_indices = @transform_1, window_bounds = array<i64: 8, 1>}, {transform_indices = @transform_2, window_bounds = array<i64: 1, 8, 128>}]} {
    %c0 = arith.constant 0 : index
    %c0_0 = arith.constant 0 : index
    %0 = vector.load %arg1[%c0, %c0_0] : memref<8x32xf32, #tpu.memory_space<vmem>>, vector<8x32xf32>
    %cst = arith.constant dense<0xFF800000> : vector<8xf32>
    %1 = vector.multi_reduction <maximumf>, %0, %cst [1] : vector<8x32xf32> to vector<8xf32>
    %2 = vector.shape_cast %1 : vector<8xf32> to vector<8x1xf32>
    %3 = vector.broadcast %2 : vector<8x1xf32> to vector<8x32xf32>
    %4 = arith.subf %0, %3 : vector<8x32xf32>
    %5 = math.exp %4 : vector<8x32xf32>
    %cst_1 = arith.constant dense<0.000000e+00> : vector<8xf32>
    %6 = vector.multi_reduction <add>, %5, %cst_1 [1] : vector<8x32xf32> to vector<8xf32>
    %7 = vector.shape_cast %6 : vector<8xf32> to vector<8x1xf32>
    %8 = math.log %7 : vector<8x1xf32>
    %9 = tpu.iota {dimensions = array<i32: 1>} : vector<8x32xi32>
    %c0_2 = arith.constant 0 : index
    %c0_3 = arith.constant 0 : index
    %10 = vector.load %arg2[%c0_2, %c0_3] : memref<8x1xi32, #tpu.memory_space<vmem>>, vector<8x1xi32>
    %11 = vector.broadcast %10 : vector<8x1xi32> to vector<8x32xi32>
    %12 = arith.cmpi eq, %9, %11 : vector<8x32xi32>
    %cst_4 = arith.constant 0.000000e+00 : f32
    %13 = vector.broadcast %cst_4 : f32 to vector<8x32xf32>
    %14 = arith.select %12, %4, %13 : vector<8x32xi1>, vector<8x32xf32>
    %15 = vector.shape_cast %14 : vector<8x32xf32> to vector<1x8x32xf32>
    %cst_5 = arith.constant dense<0.000000e+00> : vector<1xf32>
    %16 = vector.multi_reduction <add>, %15, %cst_5 [1, 2] : vector<1x8x32xf32> to vector<1xf32>
    %17 = vector.shape_cast %16 : vector<1xf32> to vector<1x1x1xf32>
    %18 = vector.extract %17[0, 0, 0] : f32 from vector<1x1x1xf32>
    %19 = vector.shape_cast %4 : vector<8x32xf32> to vector<1x8x32xf32>
    %cst_6 = arith.constant dense<0.000000e+00> : vector<1xf32>
    %20 = vector.multi_reduction <add>, %19, %cst_6 [1, 2] : vector<1x8x32xf32> to vector<1xf32>
    %21 = vector.shape_cast %20 : vector<1xf32> to vector<1x1x1xf32>
    %22 = vector.extract %21[0, 0, 0] : f32 from vector<1x1x1xf32>
    %23 = vector.shape_cast %8 : vector<8x1xf32> to vector<1x8x1xf32>
    %cst_7 = arith.constant dense<0.000000e+00> : vector<1xf32>
    %24 = vector.multi_reduction <add>, %23, %cst_7 [1, 2] : vector<1x8x1xf32> to vector<1xf32>
    %25 = vector.shape_cast %24 : vector<1xf32> to vector<1x1x1xf32>
    %26 = vector.extract %25[0, 0, 0] : f32 from vector<1x1x1xf32>
    %cst_8 = arith.constant 0.899999976 : f32
    %27 = arith.mulf %cst_8, %18 : f32
    %28 = arith.subf %26, %27 : f32
    %cst_9 = arith.constant 3.125000e-03 : f32
    %29 = arith.mulf %cst_9, %22 : f32
    %30 = arith.subf %28, %29 : f32
    %cst_10 = arith.constant 0.000000e+00 : f32
    %31 = vector.broadcast %cst_10 : f32 to vector<1x8x128xf32>
    %32 = vector.broadcast %30 : f32 to vector<1x8x128xf32>
    %33 = arith.addf %31, %32 : vector<1x8x128xf32>
    %c0_11 = arith.constant 0 : index
    %c0_12 = arith.constant 0 : index
    %c0_13 = arith.constant 0 : index
    %34 = vector.load %arg3[%c0_11, %c0_12, %c0_13] : memref<1x8x128xf32, #tpu.memory_space<vmem>>, vector<1x8x128xf32>
    tpu.vector_store %arg3[%c0_11, %c0_12, %c0_13], %33 {strides = array<i32>} : memref<1x8x128xf32, #tpu.memory_space<vmem>>, vector<1x8x128xf32>,
    return
  }
  func.func @transform_0(%arg0: i32) -> (i32, i32) {
    %c0_i32 = arith.constant 0 : i32
    %c0_i32_0 = arith.constant 0 : i32
    return %arg0, %c0_i32 : i32, i32
  }
  func.func @transform_1(%arg0: i32) -> (i32, i32) {
    %c0_i32 = arith.constant 0 : i32
    %c0_i32_0 = arith.constant 0 : i32
    return %arg0, %c0_i32 : i32, i32
  }
  func.func @transform_2(%arg0: i32) -> (i32, i32, i32) {
    %c0_i32 = arith.constant 0 : i32
    %c0_i32_0 = arith.constant 0 : i32
    %c0_i32_1 = arith.constant 0 : i32
    return %arg0, %c0_i32, %c0_i32_0 : i32, i32, i32
  }
}

</mosaic_0001>

<llo_original>
// kernel: tpu_custom_call.1
$region0: #{tpu_custom_call.1}
  #allocation0 [shape = 'u32[]', space=smem, size = 0x4, offset = 0x4, fixed_abs, tag = 'smem constant byte address 0x4 - core index']
  #allocation1 [shape = 'u32[144,128]{1,0:T(1,128)}', space=vmem, size = 0x12000, scoped, tag = 'internal scratch']
  %s0 = inlined_call_operand.hbm [shape: f32[8,32], index: 0, kind: input, shape index: {}]
  %s1 = inlined_call_operand.hbm [shape: s32[8,1], index: 1, kind: input, shape index: {}]
  %s2 = inlined_call_operand.hbm [shape: f32[1,8,128], index: 2, kind: output, shape index: {}]
  %s3 = sld [smem:[#allocation0]]
  $region26: #{tpu_custom_call.1} parent=0
    _
  %s5 = ssub.s32 1, %s3
  %s6 = scalar_select 0, %s5, %s3
  $region1: #{tpu_custom_call.1} parent=0
    #allocation2 [shape = 'u8[4096]{0}', space=vmem, size = 0x1000, scoped, tag = 'input window, operand 0, single buffered']
    #allocation3 [shape = 's32[1]{0}', space=sflag, size = 0x4, scoped, tag = 'scoped memory for tpu_custom_call.1']
    #allocation4 [shape = 's32[1]{0}', space=sflag, size = 0x4, scoped, tag = 'scoped memory for tpu_custom_call.1']
    #allocation5 [shape = 'u8[4096]{0}', space=vmem, size = 0x1000, scoped, tag = 'input window, operand 1, single buffered']
    #allocation6 [shape = 's32[1]{0}', space=sflag, size = 0x4, scoped, tag = 'scoped memory for tpu_custom_call.1']
    #allocation7 [shape = 'u8[4096]{0}', space=vmem, size = 0x1000, scoped, tag = 'output window, operand 0, single buffered']
    %7 = vsyncpa [#allocation3], 0
    %8 = vsyncpa [#allocation6], 0
    %9 = vsyncpa [#allocation4], 0
    // Predicated region
    $region2: #{tpu_custom_call.1} parent=1 // pred_check
      _
    $region3: #{tpu_custom_call.1} parent=1 // pred_check_branch
      %11 = sbr.rel (0) target = $region5
    $region4: #{tpu_custom_call.1} parent=1 // pred_region
      %s13 = ssub.s32 128, 128
      %14 = vsyncadd [#allocation3], %s13
      %s16 = sshll.u32 [#allocation2], 4
      %s17 = int_to_ptr.vmem [resolvable:$true] %s16
      %19 = dma.hbm_to_vmem [thread:$0]  %s0, 128, %s17, [#allocation3]
    $region5: #{tpu_custom_call.1} parent=1 // pred_fallthru
      _
    // Predicated region
    $region6: #{tpu_custom_call.1} parent=1 // pred_check
      _
    $region7: #{tpu_custom_call.1} parent=1 // pred_check_branch
      %21 = sbr.rel (0) target = $region9
    $region8: #{tpu_custom_call.1} parent=1 // pred_region
      %s23 = ssub.s32 128, 128
      %24 = vsyncadd [#allocation6], %s23
      %s26 = sshll.u32 [#allocation5], 4
      %s27 = int_to_ptr.vmem [resolvable:$true] %s26
      %29 = dma.hbm_to_vmem [thread:$0]  %s1, 128, %s27, [#allocation6]
    $region9: #{tpu_custom_call.1} parent=1 // pred_fallthru
      _
    // Predicated region
    $region10: #{tpu_custom_call.1} parent=1 // pred_check
      _
    $region11: #{tpu_custom_call.1} parent=1 // pred_check_branch
      %31 = sbr.rel (0) target = $region13
    $region12: #{tpu_custom_call.1} parent=1 // pred_region
      %32 = dma.done [#allocation3], 128
    $region13: #{tpu_custom_call.1} parent=1 // pred_fallthru
      _
    // Predicated region
    $region14: #{tpu_custom_call.1} parent=1 // pred_check
      _
    $region15: #{tpu_custom_call.1} parent=1 // pred_check_branch
      %34 = sbr.rel (0) target = $region17
    $region16: #{tpu_custom_call.1} parent=1 // pred_region
      %35 = dma.done [#allocation6], 128
    $region17: #{tpu_custom_call.1} parent=1 // pred_fallthru
      _
    %v36 = vld [vmem:[#allocation2] sm:$0xff]
    %vm37 = vcmask 261120
    %v38 = vsel %vm37, %v36, -inf
    %39 = vmax.xlane.f32.xlu0 %v38
    %v40 = vpop.xlane.xlu0 %39
    %v41 = vsub.f32 %v36, %v40
    %v42 = vmul.f32 %v41, 1.442695
    %v43 = vpow.pop %v42
    %v44 = vsel %vm37, %v43, 0.0
    %45 = vadd.xlane.f32.xlu0 %v44
    %v46 = vpop.xlane.xlu0 %45
    %v47 = vlog2.pop %v46
    %v48 = vmul.f32 %v47, 0.6931472
    %v49 = vlaneseq
    %v50 = vand.u32 %v49, 127
    %v51 = vld [vmem:[#allocation5] sm:$0xff]
    %52 = vset.pattern.permute.xlu0 0
    %53 = vperm.xlu0 %52, %v51
    %v54 = vpop.permute.xlu0 %53
    %vm55 = vcmp.eq.s32.totalorder %v50, %v54
    %v56 = vsel %vm55, %v41, 0.0
    %v57 = vsel %vm37, %v56, 0.0
    %58 = vadd.xlane.f32.xlu0 %v57
    %v59 = vpop.xlane.xlu0 %58
    %v60 = vrot.slane %v59, 4
    %v61 = vadd.f32 %v59, %v60
    %v62 = vrot.slane %v61, 2
    %v63 = vadd.f32 %v61, %v62
    %v64 = vrot.slane %v63, 1
    %v65 = vadd.f32 %v63, %v64
    %s66 = vtos %v65
    %v67 = vsel %vm37, %v41, 0.0
    %68 = vadd.xlane.f32.xlu0 %v67
    %v69 = vpop.xlane.xlu0 %68
    %v70 = vrot.slane %v69, 4
    %v71 = vadd.f32 %v69, %v70
    %v72 = vrot.slane %v71, 2
    %v73 = vadd.f32 %v71, %v72
    %v74 = vrot.slane %v73, 1
    %v75 = vadd.f32 %v73, %v74
    %s76 = vtos %v75
    %vm77 = vcmask 7168
    %v78 = vsel %vm77, %v48, 0.0
    %79 = vadd.xlane.f32.xlu0 %v78
    %v80 = vpop.xlane.xlu0 %79
    %v81 = vrot.slane %v80, 4
    %v82 = vadd.f32 %v80, %v81
    %v83 = vrot.slane %v82, 2
    %v84 = vadd.f32 %v82, %v83
    %v85 = vrot.slane %v84, 1
    %v86 = vadd.f32 %v84, %v85
    %s87 = vtos %v86
    %s88 = smul.f32 %s66, 0.9
    %s89 = ssub.f32 %s87, %s88
    %s90 = smul.f32 %s76, 0.003125
    %s91 = ssub.f32 %s89, %s90
    %v92 = vstv %s91
    %v93 = vadd.f32 %v92, 0.0
    %94 = vst [vmem:[#allocation7] sm:$0xff] %v93
    // Predicated region
    $region18: #{tpu_custom_call.1} parent=1 // pred_check
      _
    $region19: #{tpu_custom_call.1} parent=1 // pred_check_branch
      %96 = sbr.rel (0) target = $region21
    $region20: #{tpu_custom_call.1} parent=1 // pred_region
      %s98 = ssub.s32 128, 128
      %99 = vsyncadd [#allocation4], %s98
      %s101 = sshll.u32 [#allocation7], 4
      %s102 = int_to_ptr.vmem [resolvable:$true] %s101
      %104 = dma.vmem_to_hbm [thread:$0]  %s102, 128, %s2, [#allocation4]
    $region21: #{tpu_custom_call.1} parent=1 // pred_fallthru
      _
    // Predicated region
    $region22: #{tpu_custom_call.1} parent=1 // pred_check
      _
    $region23: #{tpu_custom_call.1} parent=1 // pred_check_branch
      %106 = sbr.rel (0) target = $region25
    $region24: #{tpu_custom_call.1} parent=1 // pred_region
      %107 = dma.done [#allocation4], 128
    $region25: #{tpu_custom_call.1} parent=1 // pred_fallthru
      _
    %108 = vsyncpa [#allocation3], 1
    %109 = vsyncpa [#allocation6], 1
    %110 = vsyncpa [#allocation4], 1

</llo_original>
